<compile_context>
chip_gen: v6e
topology: v6e:2x2x1
jax: 0.10.0
libtpu: 0.0.40
codegen_flags: <defaults>
</compile_context>

<pallas_src>
import functools

import jax
import jax.numpy as jnp
from jax.experimental import pallas as pl
from jax.experimental.pallas import tpu as pltpu


def _round_up(x: int, m: int) -> int:
    return ((x + m - 1) // m) * m


# --------------------------------------------------------------------------- #
# Pass 1: fused [Wq; Wk; Wv] 1x1-conv projection (hoisted out of attention).
# --------------------------------------------------------------------------- #
def _qkv_proj_kernel(x_ref, w_ref, b_ref, q_ref, k_ref, v_ref, *, c8p):
    # x_ref : (1, Cp, T) channel-major input tile
    # w_ref : (Dall, Cp) fused [Wq; Wk; Wv] (PyTorch (out, in) order, zero padded)
    # b_ref : (Dall, 1)  fused biases (f32)
    x = x_ref[0]                                                   # (Cp, T)
    y = jax.lax.dot_general(                                       # (Dall, T) f32
        w_ref[...], x,
        dimension_numbers=(((1,), (0,)), ((), ())),
        preferred_element_type=jnp.float32) + b_ref[...]
    # Q stays channel-major, V stays channel-major; K is emitted token-major so
    # the attention kernel needs no transposes.  Cast *before* the K transpose
    # to halve the XLU bytes when the compute dtype is bf16.
    q_ref[0] = y[:c8p, :].astype(q_ref.dtype)                      # (C8p, T)
    k_ref[0] = jnp.transpose(y[c8p:2 * c8p, :].astype(k_ref.dtype))  # (T, C8p)
    v_ref[0] = y[2 * c8p:, :].astype(v_ref.dtype)                  # (Cp, T)


# --------------------------------------------------------------------------- #
# Pass 2: flash-style attention with online softmax (key-major scores,
# channel-major accumulator -> zero in-kernel transposes).
# --------------------------------------------------------------------------- #
def _sagan_attn_kernel(q_ref, k_ref, v_ref, xq_ref, kmask_ref, gamma_ref, o_ref,
                       m_scr, l_scr, acc_scr, *, exp_dtype):
    # q_ref    : (1, C8p, Tq) channel-major Q tile (query tile)
    # k_ref    : (1, Tk, C8p) token-major K tile   (key tile)
    # v_ref    : (1, Cp, Tk)  channel-major V tile (key tile)
    # xq_ref   : (1, Cp, Tq)  channel-major input tile (residual)
    # kmask_ref: (Tk, 1) additive key-padding bias (0 valid / -1e30 padded)
    # gamma_ref: (1, 1) f32 in SMEM
    ki = pl.program_id(2)
    nk = pl.num_programs(2)

    # ---- once per query tile: online-softmax state init ----
    @pl.when(ki == 0)
    def _():
        m_scr[...] = jnp.full(m_scr.shape, -jnp.inf, jnp.float32)
        l_scr[...] = jnp.zeros(l_scr.shape, jnp.float32)
        acc_scr[...] = jnp.zeros(acc_scr.shape, jnp.float32)

    q = q_ref[0]                                                   # (C8p, Tq)
    k = k_ref[0]                                                   # (Tk, C8p)
    v = v_ref[0]                                                   # (Cp, Tk)

    # key-major scores: s[kj, qi] = <k_kj, q_qi>   (NN matmul, f32 accumulate)
    s = jax.lax.dot_general(
        k, q, dimension_numbers=(((1,), (0,)), ((), ())),
        preferred_element_type=jnp.float32)                        # (Tk, Tq)
    # padded key tokens: single broadcast-add (nonzero only on the last tile)
    s = s + kmask_ref[...]                                         # (Tk,1) + (Tk,Tq)

    # ---- online softmax over keys (keys live on the sublane axis) ----
    m_prev = m_scr[...]                                            # (1, Tq)
    m_new = jnp.maximum(m_prev, jnp.max(s, axis=0, keepdims=True))
    alpha = jnp.exp(m_prev - m_new)                                # (1, Tq) f32
    p = jnp.exp((s - m_new).astype(exp_dtype))                     # (Tk, Tq)
    l_scr[...] = alpha * l_scr[...] + jnp.sum(
        p.astype(jnp.float32), axis=0, keepdims=True)
    # acc[c, qi] += sum_kj v[c, kj] * p[kj, qi]   (NN matmul, channel-major acc)
    acc_scr[...] = alpha * acc_scr[...] + jax.lax.dot_general(
        v, p.astype(v.dtype), dimension_numbers=(((1,), (0,)), ((), ())),
        preferred_element_type=jnp.float32)                        # (Cp, Tq)
    m_scr[...] = m_new

    # ---- once per query tile: exact normalize, gamma residual, store ----
    @pl.when(ki == nk - 1)
    def _():
        out_cm = acc_scr[...] / l_scr[...]                         # exact divide
        gamma = gamma_ref[0, 0]
        o_ref[0] = (gamma * out_cm
                    + xq_ref[0].astype(jnp.float32)).astype(o_ref.dtype)


def self_attention_pallas(x_nchw, wq, bq, wk, bk, wv, bv, gamma, *,
                          max_tile=None, compute_dtype=None, exp_in_bf16=None):
    """x_nchw: (B, C, H, W).  wq/wk: (C//8, C), wv: (C, C) (PyTorch (out,in));
    bq/bk: (C//8,), bv: (C,); gamma: scalar/(1,).

    compute_dtype: optional MXU operand dtype (e.g. jnp.bfloat16 for f32 models);
    softmax stats / accumulator / bias / residual always stay f32.
    exp_in_bf16: force the exp dtype; default = (compute dtype is bf16), which is
    the v6e/v7x recommendation (keep False/f32 on v5e or for f32 models).
    """
    B, C, H, W = x_nchw.shape
    assert C % 8 == 0 and C >= 8, "in_channels must be a positive multiple of 8"
    N = H * W
    assert N >= 1
    C8 = C // 8
    dt = x_nchw.dtype
    cdt = jnp.dtype(compute_dtype) if compute_dtype is not None else jnp.dtype(dt)

    LANE = 128
    Cp = _round_up(C, LANE)                  # lane-dense channel dim
    C8p = _round_up(C8, LANE)                # 128-deep (zero-padded) QK contraction
    Dall = 2 * C8p + Cp                      # fused Q|K|V projection width

    # generation-aware tile size and VMEM cap (128 MiB v5e/v6e -> T up to 1024;
    # 64 MiB v7x -> T = 512), with a conservative fallback.
    try:
        info = pltpu.get_tpu_info()
        vmem_cap = int(getattr(info, "vmem_capacity_bytes", 64 * 1024 * 1024))
    except Exception:  # pragma: no cover - conservative fallback
        vmem_cap = 64 * 1024 * 1024
    if max_tile is None:
        max_tile = 1024 if vmem_cap >= 96 * 1024 * 1024 else 512
    T = min(max_tile, _round_up(N, LANE))    # query/key token tile (multiple of 128)
    Npad = _round_up(N, T)
    nq = Npad // T
    nk = Npad // T

    # channel-major (B, Cp, Npad): reshape + zero-pad only (no HBM transpose pass)
    x_cm = x_nchw.reshape(B, C, N)
    if (Cp, Npad) != (C, N):
        x_cm = jnp.pad(x_cm, ((0, 0), (0, Cp - C), (0, Npad - N)))
    x_proj = x_cm.astype(cdt)

    # fused [Wq; Wk; Wv] weight (PyTorch (out, in) order, zero padded); biases f32
    wqkv = jnp.zeros((Dall, Cp), cdt)
    wqkv = wqkv.at[:C8, :C].set(wq.astype(cdt))
    wqkv = wqkv.at[C8p:C8p + C8, :C].set(wk.astype(cdt))
    wqkv = wqkv.at[2 * C8p:2 * C8p + C, :C].set(wv.astype(cdt))
    bqkv = jnp.zeros((Dall, 1), jnp.float32)
    bqkv = bqkv.at[:C8, 0].set(bq.astype(jnp.float32))
    bqkv = bqkv.at[C8p:C8p + C8, 0].set(bk.astype(jnp.float32))
    bqkv = bqkv.at[2 * C8p:2 * C8p + C, 0].set(bv.astype(jnp.float32))

    # ---- pass 1: fused Q/K/V projection, grid = (B, token tiles) ----
    # (weights are small and grid-invariant; they no longer appear at all in the
    #  attention kernel, which is what the "single-buffer the weights" feedback
    #  was ultimately buying headroom for.)
    q_all, k_all, v_all = pl.pallas_call(
        functools.partial(_qkv_proj_kernel, c8p=C8p),
        out_shape=(
            jax.ShapeDtypeStruct((B, C8p, Npad), cdt),   # Q channel-major
            jax.ShapeDtypeStruct((B, Npad, C8p), cdt),   # K token-major
            jax.ShapeDtypeStruct((B, Cp, Npad), cdt),    # V channel-major
        ),
        grid_spec=pltpu.PrefetchScalarGridSpec(
            num_scalar_prefetch=0,
            grid=(B, Npad // T),
            in_specs=[
                pl.BlockSpec((1, Cp, T), lambda b, t: (b, 0, t)),
                pl.BlockSpec((Dall, Cp), lambda b, t: (0, 0)),
                pl.BlockSpec((Dall, 1), lambda b, t: (0, 0)),
            ],
            out_specs=(
                pl.BlockSpec((1, C8p, T), lambda b, t: (b, 0, t)),
                pl.BlockSpec((1, T, C8p), lambda b, t: (b, t, 0)),
                pl.BlockSpec((1, Cp, T), lambda b, t: (b, 0, t)),
            ),
        ),
        compiler_params=pltpu.CompilerParams(
            dimension_semantics=("parallel", "parallel")),
    )(x_proj, wqkv, bqkv)

    # additive key-padding bias: 0 for real tokens, -1e30 for padded tokens
    kmask = jnp.where(jnp.arange(Npad) < N, 0.0, -1e30)
    kmask = kmask.astype(jnp.float32).reshape(Npad, 1)
    gamma2 = jnp.asarray(gamma, jnp.float32).reshape(1, 1)

    exp_dtype = jnp.bfloat16 if (
        exp_in_bf16 if exp_in_bf16 is not None
        else cdt == jnp.dtype(jnp.bfloat16)) else jnp.float32

    # explicit VMEM budget from the actual tile footprint (+2x headroom), capped
    # by a fraction of the *queried* per-core VMEM capacity (v7x: 64 MiB).
    esz = jnp.dtype(cdt).itemsize
    osz = jnp.dtype(dt).itemsize
    vmem_est = (
        2 * (C8p * T + T * C8p + Cp * T) * esz    # q, k, v (double-buffered)
        + 2 * Cp * T * osz                        # x residual (double-buffered)
        + 2 * Cp * T * osz                        # out (double-buffered)
        + 2 * T * 4                               # kmask
        + Cp * T * 4 + 2 * T * 4                  # acc, m, l scratch
        + 4 * T * T * 4                           # live s / p copies + headroom
    )
    cap = max(int(0.6 * vmem_cap), 32 * 1024 * 1024)
    vmem_limit = int(min(max(2 * vmem_est, 32 * 1024 * 1024), cap))

    # ---- pass 2: flash attention.  grid = (B, nq, nk); batch & query-tile axes
    # are "parallel" (on v7x the megacore shards B*nq — keep it >= 2 and ideally
    # even; for B==1, nq==1 shapes a smaller T re-balances), key axis sequential.
    out_cm = pl.pallas_call(
        functools.partial(_sagan_attn_kernel, exp_dtype=exp_dtype),
        out_shape=jax.ShapeDtypeStruct((B, Cp, Npad), dt),
        grid_spec=pltpu.PrefetchScalarGridSpec(
            num_scalar_prefetch=0,
            grid=(B, nq, nk),
            in_specs=[
                pl.BlockSpec((1, C8p, T), lambda b, qi, ki: (b, 0, qi)),  # Q
                pl.BlockSpec((1, T, C8p), lambda b, qi, ki: (b, ki, 0)),  # K
                pl.BlockSpec((1, Cp, T), lambda b, qi, ki: (b, 0, ki)),   # V
                pl.BlockSpec((1, Cp, T), lambda b, qi, ki: (b, 0, qi)),   # x residual
                pl.BlockSpec((T, 1), lambda b, qi, ki: (ki, 0)),          # key-pad bias
                pl.BlockSpec(memory_space=pltpu.MemorySpace.SMEM),        # gamma
            ],
            out_specs=pl.BlockSpec((1, Cp, T), lambda b, qi, ki: (b, 0, qi)),
            scratch_shapes=[
                pltpu.VMEM((1, T), jnp.float32),    # running max (row form)
                pltpu.VMEM((1, T), jnp.float32),    # running denominator (row form)
                pltpu.VMEM((Cp, T), jnp.float32),   # channel-major output accumulator
            ],
        ),
        compiler_params=pltpu.CompilerParams(
            dimension_semantics=("parallel", "parallel", "arbitrary"),
            vmem_limit_bytes=vmem_limit),
    )(q_all, k_all, v_all, x_cm, kmask, gamma2)

    return out_cm[:, :C, :N].reshape(B, C, H, W)


def self_attention_ref(x_nchw, wq, bq, wk, bk, wv, bv, gamma):
    """Pure-JAX reference mirroring the PyTorch forward exactly (NCHW)."""
    B, C, H, W = x_nchw.shape
    N = H * W
    hp = jax.lax.Precision.HIGHEST
    x = x_nchw.reshape(B, C, N)
    q = jnp.einsum('oc,bcn->bon', wq, x, precision=hp) + bq[None, :, None]
    k = jnp.einsum('oc,bcn->bon', wk, x, precision=hp) + bk[None, :, None]
    v = jnp.einsum('oc,bcn->bon', wv, x, precision=hp) + bv[None, :, None]
    q = jnp.transpose(q, (0, 2, 1))
    attn = jnp.einsum('bnc,bcm->bnm', q, k, precision=hp)
    attn = jax.nn.softmax(attn, axis=-1)
    out = jnp.einsum('bcn,bmn->bcm', v, attn, precision=hp)
    return gamma * out.reshape(B, C, H, W) + x_nchw


if __name__ == "__main__":
    key = jax.random.PRNGKey(0)
    B, C, H, W = 2, 32, 16, 16           # C divisible by 8 -> C//8 = 4, N = 256
    C8 = C // 8

    k_x, k_wq, k_bq, k_wk, k_bk, k_wv, k_bv = jax.random.split(key, 7)
    x = jax.random.normal(k_x, (B, C, H, W), jnp.float32)
    wq = jax.random.normal(k_wq, (C8, C), jnp.float32) * 0.1
    bq = jax.random.normal(k_bq, (C8,), jnp.float32) * 0.1
    wk = jax.random.normal(k_wk, (C8, C), jnp.float32) * 0.1
    bk = jax.random.normal(k_bk, (C8,), jnp.float32) * 0.1
    wv = jax.random.normal(k_wv, (C, C), jnp.float32) * 0.1
    bv = jax.random.normal(k_bv, (C,), jnp.float32) * 0.1
    # PyTorch inits gamma to 0 (output == input); nonzero here to exercise attention.
    gamma = jnp.array([0.5], jnp.float32)

    out = self_attention_pallas(x, wq, bq, wk, bk, wv, bv, gamma)
    out = jax.block_until_ready(out)

    ref = self_attention_ref(x, wq, bq, wk, bk, wv, bv, gamma)
    assert out.shape == x.shape
    err = jnp.max(jnp.abs(out - ref))
    # tolerance tightened back from 1e-2 (exact softmax normalization now)
    assert jnp.allclose(out, ref, atol=5e-3, rtol=5e-3), f"max abs err {err}"

    print("KERNEL_OK")
</pallas_src>

<mosaic_0001>
module attributes {stable_mosaic.version = 11 : i64} {
  func.func @_qkv_proj_kernel(%arg0: i32, %arg1: i32, %arg2: memref<1x128x256xf32, #tpu.memory_space<vmem>>, %arg3: memref<384x128xf32, #tpu.memory_space<vmem>>, %arg4: memref<384x1xf32, #tpu.memory_space<vmem>>, %arg5: memref<1x128x256xf32, #tpu.memory_space<vmem>>, %arg6: memref<1x256x128xf32, #tpu.memory_space<vmem>>, %arg7: memref<1x128x256xf32, #tpu.memory_space<vmem>>) attributes {dimension_semantics = [#tpu.dimension_semantics<parallel>, #tpu.dimension_semantics<parallel>], iteration_bounds = array<i64: 2, 1>, scalar_prefetch = 0 : i64, scratch_operands = 0 : i64, tpu.core_type = #tpu.core_type<tc>, window_params = [{transform_indices = @transform_0, window_bounds = array<i64: 1, 128, 256>}, {pipeline_mode = #tpu.pipeline_mode<synchronous>, transform_indices = @transform_1, window_bounds = array<i64: 384, 128>}, {pipeline_mode = #tpu.pipeline_mode<synchronous>, transform_indices = @transform_2, window_bounds = array<i64: 384, 1>}, {transform_indices = @transform_3, window_bounds = array<i64: 1, 128, 256>}, {transform_indices = @transform_4, window_bounds = array<i64: 1, 256, 128>}, {transform_indices = @transform_5, window_bounds = array<i64: 1, 128, 256>}]} {
    %c0 = arith.constant 0 : index
    %c0_0 = arith.constant 0 : index
    %c0_1 = arith.constant 0 : index
    %0 = vector.load %arg2[%c0, %c0_0, %c0_1] : memref<1x128x256xf32, #tpu.memory_space<vmem>>, vector<1x128x256xf32>
    %1 = vector.shape_cast %0 : vector<1x128x256xf32> to vector<128x256xf32>
    %c0_2 = arith.constant 0 : index
    %c0_3 = arith.constant 0 : index
    %2 = vector.load %arg3[%c0_2, %c0_3] : memref<384x128xf32, #tpu.memory_space<vmem>>, vector<384x128xf32>
    %cst = arith.constant dense<0.000000e+00> : vector<384x256xf32>
    %3 = tpu.matmul %2, %1, %cst {dimension_numbers = #tpu.dot_dimension_numbers<[1], [0], [0], [1], [0, 0, 1, 1], [], []>} : vector<384x128xf32>, vector<128x256xf32>, vector<384x256xf32> -> vector<384x256xf32>
    %c0_4 = arith.constant 0 : index
    %c0_5 = arith.constant 0 : index
    %4 = vector.load %arg4[%c0_4, %c0_5] : memref<384x1xf32, #tpu.memory_space<vmem>>, vector<384x1xf32>
    %5 = vector.broadcast %4 : vector<384x1xf32> to vector<384x256xf32>
    %6 = arith.addf %3, %5 : vector<384x256xf32>
    %7 = vector.extract_strided_slice %6 {offsets = [0, 0], sizes = [128, 256], strides = [1, 1]} : vector<384x256xf32> to vector<128x256xf32>
    %c0_6 = arith.constant 0 : index
    %c0_7 = arith.constant 0 : index
    %c0_8 = arith.constant 0 : index
    %8 = vector.load %arg5[%c0_6, %c0_7, %c0_8] : memref<1x128x256xf32, #tpu.memory_space<vmem>>, vector<1x128x256xf32>
    %9 = vector.shape_cast %8 : vector<1x128x256xf32> to vector<128x256xf32>
    %10 = vector.shape_cast %7 : vector<128x256xf32> to vector<1x128x256xf32>
    tpu.vector_store %arg5[%c0_6, %c0_7, %c0_8], %10 {strides = array<i32>} : memref<1x128x256xf32, #tpu.memory_space<vmem>>, vector<1x128x256xf32>,
    %11 = vector.extract_strided_slice %6 {offsets = [128, 0], sizes = [128, 256], strides = [1, 1]} : vector<384x256xf32> to vector<128x256xf32>
    %12 = tpu.transpose %11, [1, 0] : vector<128x256xf32> -> vector<256x128xf32>
    %c0_9 = arith.constant 0 : index
    %c0_10 = arith.constant 0 : index
    %c0_11 = arith.constant 0 : index
    %13 = vector.load %arg6[%c0_9, %c0_10, %c0_11] : memref<1x256x128xf32, #tpu.memory_space<vmem>>, vector<1x256x128xf32>
    %14 = vector.shape_cast %13 : vector<1x256x128xf32> to vector<256x128xf32>
    %15 = vector.shape_cast %12 : vector<256x128xf32> to vector<1x256x128xf32>
    tpu.vector_store %arg6[%c0_9, %c0_10, %c0_11], %15 {strides = array<i32>} : memref<1x256x128xf32, #tpu.memory_space<vmem>>, vector<1x256x128xf32>,
    %16 = vector.extract_strided_slice %6 {offsets = [256, 0], sizes = [128, 256], strides = [1, 1]} : vector<384x256xf32> to vector<128x256xf32>
    %c0_12 = arith.constant 0 : index
    %c0_13 = arith.constant 0 : index
    %c0_14 = arith.constant 0 : index
    %17 = vector.load %arg7[%c0_12, %c0_13, %c0_14] : memref<1x128x256xf32, #tpu.memory_space<vmem>>, vector<1x128x256xf32>
    %18 = vector.shape_cast %17 : vector<1x128x256xf32> to vector<128x256xf32>
    %19 = vector.shape_cast %16 : vector<128x256xf32> to vector<1x128x256xf32>
    tpu.vector_store %arg7[%c0_12, %c0_13, %c0_14], %19 {strides = array<i32>} : memref<1x128x256xf32, #tpu.memory_space<vmem>>, vector<1x128x256xf32>,
    return
  }
  func.func @transform_0(%arg0: i32, %arg1: i32) -> (i32, i32, i32) {
    %c0_i32 = arith.constant 0 : i32
    %c0_i32_0 = arith.constant 0 : i32
    return %arg0, %c0_i32, %arg1 : i32, i32, i32
  }
  func.func @transform_1(%arg0: i32, %arg1: i32) -> (i32, i32) {
    %c0_i32 = arith.constant 0 : i32
    %c0_i32_0 = arith.constant 0 : i32
    %c0_i32_1 = arith.constant 0 : i32
    return %c0_i32, %c0_i32_0 : i32, i32
  }
  func.func @transform_2(%arg0: i32, %arg1: i32) -> (i32, i32) {
    %c0_i32 = arith.constant 0 : i32
    %c0_i32_0 = arith.constant 0 : i32
    %c0_i32_1 = arith.constant 0 : i32
    return %c0_i32, %c0_i32_0 : i32, i32
  }
  func.func @transform_3(%arg0: i32, %arg1: i32) -> (i32, i32, i32) {
    %c0_i32 = arith.constant 0 : i32
    %c0_i32_0 = arith.constant 0 : i32
    return %arg0, %c0_i32, %arg1 : i32, i32, i32
  }
  func.func @transform_4(%arg0: i32, %arg1: i32) -> (i32, i32, i32) {
    %c0_i32 = arith.constant 0 : i32
    %c0_i32_0 = arith.constant 0 : i32
    return %arg0, %arg1, %c0_i32 : i32, i32, i32
  }
  func.func @transform_5(%arg0: i32, %arg1: i32) -> (i32, i32, i32) {
    %c0_i32 = arith.constant 0 : i32
    %c0_i32_0 = arith.constant 0 : i32
    return %arg0, %c0_i32, %arg1 : i32, i32, i32
  }
}

</mosaic_0001>

<llo_original>
// kernel: tpu_custom_call.1
$region0: #{tpu_custom_call.1}
  #allocation0 [shape = 'u32[]', space=smem, size = 0x4, offset = 0x4, fixed_abs, tag = 'smem constant byte address 0x4 - core index']
  #allocation1 [shape = 'u32[144,128]{1,0:T(1,128)}', space=vmem, size = 0x12000, scoped, tag = 'internal scratch']
  %s0 = inlined_call_operand.hbm [shape: f32[2,128,256], index: 0, kind: input, shape index: {}]
  %s1 = inlined_call_operand.vmem [shape: f32[384,128], index: 1, kind: input, shape index: {}]
  %s2 = inlined_call_operand.vmem [shape: f32[384,1], index: 2, kind: input, shape index: {}]
  %s3 = inlined_call_operand.hbm [shape: f32[2,128,256], index: 3, kind: output, shape index: {0}]
  %s4 = inlined_call_operand.hbm [shape: f32[2,256,128], index: 4, kind: output, shape index: {1}]
  %s5 = inlined_call_operand.hbm [shape: f32[2,128,256], index: 5, kind: output, shape index: {2}]
  %6 = xla_tuple %s3, %s4, %s5
  %s7 = sld [smem:[#allocation0]]
  $region65: #{tpu_custom_call.1} parent=0
    _
  %s9 = ssub.s32 1, %s7
  %s10 = scalar_select 0, %s9, %s7
  $region1: #{tpu_custom_call.1} parent=0
    #allocation2 [shape = 'u8[262144]{0}', space=vmem, size = 0x40000, scoped, tag = 'input window, operand 0']
    #allocation3 [shape = 's32[2]{0}', space=sflag, size = 0x8, scoped, tag = 'scoped memory for tpu_custom_call.1']
    #allocation4 [shape = 's32[2]{0}', space=sflag, size = 0x8, scoped, tag = 'scoped memory for tpu_custom_call.1']
    #allocation5 [shape = 'u8[262144]{0}', space=vmem, size = 0x40000, scoped, tag = 'output window, operand 0']
    #allocation6 [shape = 'u8[262144]{0}', space=vmem, size = 0x40000, scoped, tag = 'output window, operand 1']
    #allocation7 [shape = 's32[2]{0}', space=sflag, size = 0x8, scoped, tag = 'scoped memory for tpu_custom_call.1']
    #allocation8 [shape = 'u8[262144]{0}', space=vmem, size = 0x40000, scoped, tag = 'output window, operand 2']
    %11 = vsyncpa [#allocation3], 0
    %s12 = scalar_lea.sflag [#allocation3], 1
    %13 = vsyncpa %s12, 0
    %14 = vsyncpa [#allocation4], 0
    %s15 = scalar_lea.sflag [#allocation4], 1
    %16 = vsyncpa %s15, 0
    %17 = vsyncpa [#allocation7], 0
    %s18 = scalar_lea.sflag [#allocation7], 1
    %19 = vsyncpa %s18, 0
    loop: start=0, step=1, limit=4
    $region2: #{tpu_custom_call.1} parent=1 // loop_pre_header
      _
    $region3: #{tpu_custom_call.1} parent=1 // loop_header
      %s21 = sphi 0, %s25
      %p22 = scmp.ge.s32.totalorder %s21, 4
      %s28 = sphi 0, %s40
      %s29 = sphi 0, %s36
      %s30 = sphi 0, %s28
      %s31 = sphi 0, %s29
      %s32 = sphi 0, %s30
      %s33 = sphi 0, %s31
      %s45 = sphi 0, %s47
      %s48 = sphi 0, %s45
      %s49 = sphi 0, %s48
      %s65 = sphi 0, %s49
      %s69 = sphi 0, %s69
      %s71 = sphi 0, %s69
      %s72 = sphi 0, %s71
      %s86 = sphi 0, %s72
      %s90 = sphi 0, %s90
      %s92 = sphi 0, %s90
      %s93 = sphi 0, %s92
      %s107 = sphi 0, %s93
      %s115 = sphi 0, %s117
      %s118 = sphi 0, %s115
      %s119 = sphi 0, %s118
      %s135 = sphi 0, %s119
      %s143 = sphi 0, %s145
      %s146 = sphi 0, %s143
      %s147 = sphi 0, %s146
      %s163 = sphi 0, %s147
      %s171 = sphi 0, %s173
      %s174 = sphi 0, %s171
      %s175 = sphi 0, %s174
      %s191 = sphi 0, %s175
    $region4: #{tpu_custom_call.1} parent=1 // loop_header_branch
      %24 = sbr.rel (%p22) target = $region8
    $region5: #{tpu_custom_call.1} parent=1 // loop_body
      %s26 = ssub.s32 %s21, 1
      %s27 = ssub.s32 %s21, 2
      %s34 = sadd.s32 1, %s29
      %p35 = scmp.ge.s32.totalorder %s34, 1
      %s36 = scalar_select %p35, 0, %s34
      %s37 = sadd.s32 1, %s28
      %s38 = scalar_select %p35, %s37, %s28
      %p39 = scmp.ge.s32.totalorder %s38, 2
      %s40 = scalar_select %p39, 0, %s38
      %s41 = ssub.s32 %s28, %s40
      %s42 = ssub.s32 %s29, %s36
      %s43 = sor.u32 %s41, %s42
      %p44 = scmp.eq.s32.totalorder %s43, 0
      %s46 = sadd.s32 %s45, 1
      %s47 = scalar_select %p44, %s45, %s46
      %p50 = pneg %p44
      %p51 = scmp.eq.s32.totalorder %s21, 1
      %p52 = por %p50, %p51
      %p53 = scmp.ne.s32.totalorder %s45, %s48
      %p54 = scmp.eq.s32.totalorder %s21, 0
      %p55 = por %p53, %p54
      %p56 = scmp.ne.s32.totalorder %s45, %s48
      %p57 = scmp.eq.s32.totalorder %s26, 1
      %p58 = por %p56, %p57
      %p59 = scmp.ne.s32.totalorder %s48, %s49
      %p60 = scmp.eq.s32.totalorder %s26, 0
      %p61 = por %p59, %p60
      %p62 = scmp.ne.s32.totalorder %s48, %s49
      %p63 = scmp.eq.s32.totalorder %s27, 1
      %p64 = por %p62, %p63
      %p66 = scmp.ne.s32.totalorder %s49, %s65
      %p67 = scmp.eq.s32.totalorder %s27, 0
      %p68 = por %p66, %p67
      %s70 = sadd.s32 %s69, 1
      %p73 = scmp.eq.s32.totalorder %s21, 1
      %p74 = scmp.ne.s32.totalorder %s69, %s71
      %p75 = scmp.eq.s32.totalorder %s21, 0
      %p76 = por %p74, %p75
      %p77 = scmp.ne.s32.totalorder %s69, %s71
      %p78 = scmp.eq.s32.totalorder %s26, 1
      %p79 = por %p77, %p78
      %p80 = scmp.ne.s32.totalorder %s71, %s72
      %p81 = scmp.eq.s32.totalorder %s26, 0
      %p82 = por %p80, %p81
      %p83 = scmp.ne.s32.totalorder %s71, %s72
      %p84 = scmp.eq.s32.totalorder %s27, 1
      %p85 = por %p83, %p84
      %p87 = scmp.ne.s32.totalorder %s72, %s86
      %p88 = scmp.eq.s32.totalorder %s27, 0
      %p89 = por %p87, %p88
      %s91 = sadd.s32 %s90, 1
      %p94 = scmp.eq.s32.totalorder %s21, 1
      %p95 = scmp.ne.s32.totalorder %s90, %s92
      %p96 = scmp.eq.s32.totalorder %s21, 0
      %p97 = por %p95, %p96
      %p98 = scmp.ne.s32.totalorder %s90, %s92
      %p99 = scmp.eq.s32.totalorder %s26, 1
      %p100 = por %p98, %p99
      %p101 = scmp.ne.s32.totalorder %s92, %s93
      %p102 = scmp.eq.s32.totalorder %s26, 0
      %p103 = por %p101, %p102
      %p104 = scmp.ne.s32.totalorder %s92, %s93
      %p105 = scmp.eq.s32.totalorder %s27, 1
      %p106 = por %p104, %p105
      %p108 = scmp.ne.s32.totalorder %s93, %s107
      %p109 = scmp.eq.s32.totalorder %s27, 0
      %p110 = por %p108, %p109
      %s111 = ssub.s32 %s28, %s40
      %s112 = ssub.s32 %s29, %s36
      %s113 = sor.u32 %s111, %s112
      %p114 = scmp.eq.s32.totalorder %s113, 0
      %s116 = sadd.s32 %s115, 1
      %s117 = scalar_select %p114, %s115, %s116
      %p120 = pneg %p114
      %p121 = scmp.eq.s32.totalorder %s21, 1
      %p122 = por %p120, %p121
      %p123 = scmp.ne.s32.totalorder %s115, %s118
      %p124 = scmp.eq.s32.totalorder %s21, 0
      %p125 = por %p123, %p124
      %p126 = scmp.ne.s32.totalorder %s115, %s118
      %p127 = scmp.eq.s32.totalorder %s26, 1
      %p128 = por %p126, %p127
      %p129 = scmp.ne.s32.totalorder %s118, %s119
      %p130 = scmp.eq.s32.totalorder %s26, 0
      %p131 = por %p129, %p130
      %p132 = scmp.ne.s32.totalorder %s118, %s119
      %p133 = scmp.eq.s32.totalorder %s27, 1
      %p134 = por %p132, %p133
      %p136 = scmp.ne.s32.totalorder %s119, %s135
      %p137 = scmp.eq.s32.totalorder %s27, 0
      %p138 = por %p136, %p137
      %s139 = ssub.s32 %s28, %s40
      %s140 = ssub.s32 %s29, %s36
      %s141 = sor.u32 %s139, %s140
      %p142 = scmp.eq.s32.totalorder %s141, 0
      %s144 = sadd.s32 %s143, 1
      %s145 = scalar_select %p142, %s143, %s144
      %p148 = pneg %p142
      %p149 = scmp.eq.s32.totalorder %s21, 1
      %p150 = por %p148, %p149
      %p151 = scmp.ne.s32.totalorder %s143, %s146
      %p152 = scmp.eq.s32.totalorder %s21, 0
      %p153 = por %p151, %p152
      %p154 = scmp.ne.s32.totalorder %s143, %s146
      %p155 = scmp.eq.s32.totalorder %s26, 1
      %p156 = por %p154, %p155
      %p157 = scmp.ne.s32.totalorder %s146, %s147
      %p158 = scmp.eq.s32.totalorder %s26, 0
      %p159 = por %p157, %p158
      %p160 = scmp.ne.s32.totalorder %s146, %s147
      %p161 = scmp.eq.s32.totalorder %s27, 1
      %p162 = por %p160, %p161
      %p164 = scmp.ne.s32.totalorder %s147, %s163
      %p165 = scmp.eq.s32.totalorder %s27, 0
      %p166 = por %p164, %p165
      %s167 = ssub.s32 %s28, %s40
      %s168 = ssub.s32 %s29, %s36
      %s169 = sor.u32 %s167, %s168
      %p170 = scmp.eq.s32.totalorder %s169, 0
      %s172 = sadd.s32 %s171, 1
      %s173 = scalar_select %p170, %s171, %s172
      %p176 = pneg %p170
      %p177 = scmp.eq.s32.totalorder %s21, 1
      %p178 = por %p176, %p177
      %p179 = scmp.ne.s32.totalorder %s171, %s174
      %p180 = scmp.eq.s32.totalorder %s21, 0
      %p181 = por %p179, %p180
      %p182 = scmp.ne.s32.totalorder %s171, %s174
      %p183 = scmp.eq.s32.totalorder %s26, 1
      %p184 = por %p182, %p183
      %p185 = scmp.ne.s32.totalorder %s174, %s175
      %p186 = scmp.eq.s32.totalorder %s26, 0
      %p187 = por %p185, %p186
      %p188 = scmp.ne.s32.totalorder %s174, %s175
      %p189 = scmp.eq.s32.totalorder %s27, 1
      %p190 = por %p188, %p189
      %p192 = scmp.ne.s32.totalorder %s175, %s191
      %p193 = scmp.eq.s32.totalorder %s27, 0
      %p194 = por %p192, %p193
      %p195 = scmp.le.s32.totalorder 1, %s21
      %p196 = scmp.lt.s32.totalorder %s21, 3
      %p197 = pnand %p195, %p196
      %p198 = pneg %p197
      // Predicated region
      $region9: #{tpu_custom_call.1} parent=5 // pred_check
        _
      $region10: #{tpu_custom_call.1} parent=5 // pred_check_branch
        %200 = sbr.rel (%p197) target = $region12
      $region11: #{tpu_custom_call.1} parent=5 // pred_region
        %s201 = ssub.s32 %s21, 1
        // Predicated region
        $region13: #{tpu_custom_call.1} parent=11 // pred_check
          %p202 = pneg %p82
        $region14: #{tpu_custom_call.1} parent=11 // pred_check_branch
          %204 = sbr.rel (%p202) target = $region16
        $region15: #{tpu_custom_call.1} parent=11 // pred_region
          _
        $region16: #{tpu_custom_call.1} parent=11 // pred_fallthru
          _
        // Predicated region
        $region17: #{tpu_custom_call.1} parent=11 // pred_check
          %p205 = pneg %p103
        $region18: #{tpu_custom_call.1} parent=11 // pred_check_branch
          %207 = sbr.rel (%p205) target = $region20
        $region19: #{tpu_custom_call.1} parent=11 // pred_region
          _
        $region20: #{tpu_custom_call.1} parent=11 // pred_fallthru
          _
      $region12: #{tpu_custom_call.1} parent=5 // pred_fallthru
        _
      %p208 = scmp.lt.s32.totalorder %s21, 2
      // Predicated region
      $region21: #{tpu_custom_call.1} parent=5 // pred_check
        %p209 = pneg %p208
      $region22: #{tpu_custom_call.1} parent=5 // pred_check_branch
        %211 = sbr.rel (%p209) target = $region24
      $region23: #{tpu_custom_call.1} parent=5 // pred_region
        // Predicated region
        $region25: #{tpu_custom_call.1} parent=23 // pred_check
          %p212 = pneg %p55
        $region26: #{tpu_custom_call.1} parent=23 // pred_check_branch
          %214 = sbr.rel (%p212) target = $region28
        $region27: #{tpu_custom_call.1} parent=23 // pred_region
          %s215 = sand.u32 %s45, 1
          %s216 = scalar_lea.sflag [#allocation3], %s215
          %s217 = sand.u32 %s45, 1
          %s218 = smul.addr %s217, 256
          %s219 = scalar_lea.vmem [#allocation2], %s218
          %s220 = smul.u32 2, %s29
          %s222 = ssub.s32 4096, 4096
          %223 = vsyncadd %s216, %s222
          %s224 = smul.addr %s28, 32
          %s225 = sadd.s32 %s220, %s224
          %s226 = smul.addr %s225, 128
          %s227 = scalar_lea.hbm %s0, %s226
          %s228 = sshll.u32 %s219, 4
          %s229 = int_to_ptr.vmem [resolvable:$true] %s228
          %234 = dma.hbm_to_vmem [thread:$0]  %s227, 4096, %s229, %s216, 256, 256, 16
        $region28: #{tpu_custom_call.1} parent=23 // pred_fallthru
          _
      $region24: #{tpu_custom_call.1} parent=5 // pred_fallthru
        _
      %p235 = scmp.le.s32.totalorder 1, %s21
      %p236 = scmp.lt.s32.totalorder %s21, 3
      %p237 = pnand %p235, %p236
      %p238 = pneg %p237
      // Predicated region
      $region29: #{tpu_custom_call.1} parent=5 // pred_check
        _
      $region30: #{tpu_custom_call.1} parent=5 // pred_check_branch
        %240 = sbr.rel (%p237) target = $region32
      $region31: #{tpu_custom_call.1} parent=5 // pred_region
        %s241 = ssub.s32 %s21, 1
        %s242 = sand.u32 %s48, 1
        %s243 = scalar_lea.sflag [#allocation3], %s242
        %s244 = sand.u32 %s48, 1
        %s245 = smul.addr %s244, 256
        %s246 = scalar_lea.vmem [#allocation2], %s245
        // Predicated region
        $region33: #{tpu_custom_call.1} parent=31 // pred_check
          %p247 = pneg %p61
        $region34: #{tpu_custom_call.1} parent=31 // pred_check_branch
          %249 = sbr.rel (%p247) target = $region36
        $region35: #{tpu_custom_call.1} parent=31 // pred_region
          %250 = dma.done %s243, 4096
        $region36: #{tpu_custom_call.1} parent=31 // pred_fallthru
          _
        %s251 = sand.u32 %s48, 1
        %s252 = scalar_lea.sflag [#allocation3], %s251
        %s253 = sand.u32 %s48, 1
        %s254 = smul.addr %s253, 256
        %s255 = scalar_lea.vmem [#allocation2], %s254
        %p256 = pneg %p61
        %p257 = pneg %p58
        %p258 = pneg %p82
        %p259 = pneg %p79
        %p260 = pneg %p103
        %p261 = pneg %p100
        %p262 = pneg %p131
        %p263 = pneg %p128
        %s264 = sand.u32 %s118, 1
        %s265 = scalar_lea.sflag [#allocation4], %s264
        %s266 = sand.u32 %s118, 1
        %s267 = smul.addr %s266, 256
        %s268 = scalar_lea.vmem [#allocation5], %s267
        %p269 = pneg %p159
        %p270 = pneg %p156
        %s271 = sand.u32 %s26, 1
        %s272 = scalar_lea.sflag [#allocation7], %s271
        %s273 = sand.u32 %s146, 1
        %s274 = smul.addr %s273, 256
        %s275 = scalar_lea.vmem [#allocation6], %s274
        %p276 = pneg %p187
        %p277 = pneg %p184
        %s278 = sand.u32 %s26, 1
        %s279 = scalar_lea.sflag [#allocation7], %s278
        %s280 = sand.u32 %s174, 1
        %s281 = smul.addr %s280, 256
        %s282 = scalar_lea.vmem [#allocation8], %s281
        %s283 = smul.u32 2, %s31
        %s284 = smul.u32 2, %s31
        %s285 = smul.u32 32, %s31
        %s286 = smul.u32 2, %s31
        %v287 = vld [vmem:[%s246] sm:$0xff]
        %v288 = vld [vmem:[%s246 + $0x8] sm:$0xff]
        %v289 = vld [vmem:[%s246 + $0x10] sm:$0xff]
        %v290 = vld [vmem:[%s246 + $0x18] sm:$0xff]
        %v291 = vld [vmem:[%s246 + $0x20] sm:$0xff]
        %v292 = vld [vmem:[%s246 + $0x28] sm:$0xff]
        %v293 = vld [vmem:[%s246 + $0x30] sm:$0xff]
        %v294 = vld [vmem:[%s246 + $0x38] sm:$0xff]
        %v295 = vld [vmem:[%s246 + $0x40] sm:$0xff]
        %v296 = vld [vmem:[%s246 + $0x48] sm:$0xff]
        %v297 = vld [vmem:[%s246 + $0x50] sm:$0xff]
        %v298 = vld [vmem:[%s246 + $0x58] sm:$0xff]
        %v299 = vld [vmem:[%s246 + $0x60] sm:$0xff]
        %v300 = vld [vmem:[%s246 + $0x68] sm:$0xff]
        %v301 = vld [vmem:[%s246 + $0x70] sm:$0xff]
        %v302 = vld [vmem:[%s246 + $0x78] sm:$0xff]
        %v303 = vld [vmem:[%s246 + $0x80] sm:$0xff]
        %v304 = vld [vmem:[%s246 + $0x88] sm:$0xff]
        %v305 = vld [vmem:[%s246 + $0x90] sm:$0xff]
        %v306 = vld [vmem:[%s246 + $0x98] sm:$0xff]
        %v307 = vld [vmem:[%s246 + $0xa0] sm:$0xff]
        %v308 = vld [vmem:[%s246 + $0xa8] sm:$0xff]
        %v309 = vld [vmem:[%s246 + $0xb0] sm:$0xff]
        %v310 = vld [vmem:[%s246 + $0xb8] sm:$0xff]
        %v311 = vld [vmem:[%s246 + $0xc0] sm:$0xff]
        %v312 = vld [vmem:[%s246 + $0xc8] sm:$0xff]
        %v313 = vld [vmem:[%s246 + $0xd0] sm:$0xff]
        %v314 = vld [vmem:[%s246 + $0xd8] sm:$0xff]
        %v315 = vld [vmem:[%s246 + $0xe0] sm:$0xff]
        %v316 = vld [vmem:[%s246 + $0xe8] sm:$0xff]
        %v317 = vld [vmem:[%s246 + $0xf0] sm:$0xff]
        %v318 = vld [vmem:[%s246 + $0xf8] sm:$0xff]
        %v319 = vld [vmem:[%s1] sm:$0xff]
        %v320 = vld [vmem:[%s1 + $0x8] sm:$0xff]
        %v321 = vld [vmem:[%s1 + $0x10] sm:$0xff]
        %v322 = vld [vmem:[%s1 + $0x18] sm:$0xff]
        %v323 = vld [vmem:[%s1 + $0x20] sm:$0xff]
        %v324 = vld [vmem:[%s1 + $0x28] sm:$0xff]
        %v325 = vld [vmem:[%s1 + $0x30] sm:$0xff]
        %v326 = vld [vmem:[%s1 + $0x38] sm:$0xff]
        %v327 = vld [vmem:[%s1 + $0x40] sm:$0xff]
        %v328 = vld [vmem:[%s1 + $0x48] sm:$0xff]
        %v329 = vld [vmem:[%s1 + $0x50] sm:$0xff]
        %v330 = vld [vmem:[%s1 + $0x58] sm:$0xff]
        %v331 = vld [vmem:[%s1 + $0x60] sm:$0xff]
        %v332 = vld [vmem:[%s1 + $0x68] sm:$0xff]
        %v333 = vld [vmem:[%s1 + $0x70] sm:$0xff]
        %v334 = vld [vmem:[%s1 + $0x78] sm:$0xff]
        %v335 = vld [vmem:[%s1 + $0x80] sm:$0xff]
        %v336 = vld [vmem:[%s1 + $0x88] sm:$0xff]
        %v337 = vld [vmem:[%s1 + $0x90] sm:$0xff]
        %v338 = vld [vmem:[%s1 + $0x98] sm:$0xff]
        %v339 = vld [vmem:[%s1 + $0xa0] sm:$0xff]
        %v340 = vld [vmem:[%s1 + $0xa8] sm:$0xff]
        %v341 = vld [vmem:[%s1 + $0xb0] sm:$0xff]
        %v342 = vld [vmem:[%s1 + $0xb8] sm:$0xff]
        %v343 = vld [vmem:[%s1 + $0xc0] sm:$0xff]
        %v344 = vld [vmem:[%s1 + $0xc8] sm:$0xff]
        %v345 = vld [vmem:[%s1 + $0xd0] sm:$0xff]
        %v346 = vld [vmem:[%s1 + $0xd8] sm:$0xff]
        %v347 = vld [vmem:[%s1 + $0xe0] sm:$0xff]
        %v348 = vld [vmem:[%s1 + $0xe8] sm:$0xff]
        %v349 = vld [vmem:[%s1 + $0xf0] sm:$0xff]
        %v350 = vld [vmem:[%s1 + $0xf8] sm:$0xff]
        %v351 = vld [vmem:[%s1 + $0x100] sm:$0xff]
        %v352 = vld [vmem:[%s1 + $0x108] sm:$0xff]
        %v353 = vld [vmem:[%s1 + $0x110] sm:$0xff]
        %v354 = vld [vmem:[%s1 + $0x118] sm:$0xff]
        %v355 = vld [vmem:[%s1 + $0x120] sm:$0xff]
        %v356 = vld [vmem:[%s1 + $0x128] sm:$0xff]
        %v357 = vld [vmem:[%s1 + $0x130] sm:$0xff]
        %v358 = vld [vmem:[%s1 + $0x138] sm:$0xff]
        %v359 = vld [vmem:[%s1 + $0x140] sm:$0xff]
        %v360 = vld [vmem:[%s1 + $0x148] sm:$0xff]
        %v361 = vld [vmem:[%s1 + $0x150] sm:$0xff]
        %v362 = vld [vmem:[%s1 + $0x158] sm:$0xff]
        %v363 = vld [vmem:[%s1 + $0x160] sm:$0xff]
        %v364 = vld [vmem:[%s1 + $0x168] sm:$0xff]
        %v365 = vld [vmem:[%s1 + $0x170] sm:$0xff]
        %v366 = vld [vmem:[%s1 + $0x178] sm:$0xff]
        %v367 = vld [vmem:[%s2] sm:$0xff]
        %v368 = vld [vmem:[%s2 + $0x8] sm:$0xff]
        %v369 = vld [vmem:[%s2 + $0x10] sm:$0xff]
        %v370 = vld [vmem:[%s2 + $0x18] sm:$0xff]
        %v371 = vld [vmem:[%s2 + $0x20] sm:$0xff]
        %v372 = vld [vmem:[%s2 + $0x28] sm:$0xff]
        %v373 = vld [vmem:[%s2 + $0x30] sm:$0xff]
        %v374 = vld [vmem:[%s2 + $0x38] sm:$0xff]
        %v375 = vld [vmem:[%s2 + $0x40] sm:$0xff]
        %v376 = vld [vmem:[%s2 + $0x48] sm:$0xff]
        %v377 = vld [vmem:[%s2 + $0x50] sm:$0xff]
        %v378 = vld [vmem:[%s2 + $0x58] sm:$0xff]
        %v379 = vld [vmem:[%s2 + $0x60] sm:$0xff]
        %v380 = vld [vmem:[%s2 + $0x68] sm:$0xff]
        %v381 = vld [vmem:[%s2 + $0x70] sm:$0xff]
        %v382 = vld [vmem:[%s2 + $0x78] sm:$0xff]
        %v383 = vld [vmem:[%s2 + $0x80] sm:$0xff]
        %v384 = vld [vmem:[%s2 + $0x88] sm:$0xff]
        %v385 = vld [vmem:[%s2 + $0x90] sm:$0xff]
        %v386 = vld [vmem:[%s2 + $0x98] sm:$0xff]
        %v387 = vld [vmem:[%s2 + $0xa0] sm:$0xff]
        %v388 = vld [vmem:[%s2 + $0xa8] sm:$0xff]
        %v389 = vld [vmem:[%s2 + $0xb0] sm:$0xff]
        %v390 = vld [vmem:[%s2 + $0xb8] sm:$0xff]
        %v391 = vld [vmem:[%s2 + $0xc0] sm:$0xff]
        %v392 = vld [vmem:[%s2 + $0xc8] sm:$0xff]
        %v393 = vld [vmem:[%s2 + $0xd0] sm:$0xff]
        %v394 = vld [vmem:[%s2 + $0xd8] sm:$0xff]
        %v395 = vld [vmem:[%s2 + $0xe0] sm:$0xff]
        %v396 = vld [vmem:[%s2 + $0xe8] sm:$0xff]
        %v397 = vld [vmem:[%s2 + $0xf0] sm:$0xff]
        %v398 = vld [vmem:[%s2 + $0xf8] sm:$0xff]
        %v399 = vld [vmem:[%s2 + $0x100] sm:$0xff]
        %v400 = vld [vmem:[%s2 + $0x108] sm:$0xff]
        %v401 = vld [vmem:[%s2 + $0x110] sm:$0xff]
        %v402 = vld [vmem:[%s2 + $0x118] sm:$0xff]
        %v403 = vld [vmem:[%s2 + $0x120] sm:$0xff]
        %v404 = vld [vmem:[%s2 + $0x128] sm:$0xff]
        %v405 = vld [vmem:[%s2 + $0x130] sm:$0xff]
        %v406 = vld [vmem:[%s2 + $0x138] sm:$0xff]
        %v407 = vld [vmem:[%s2 + $0x140] sm:$0xff]
        %v408 = vld [vmem:[%s2 + $0x148] sm:$0xff]
        %v409 = vld [vmem:[%s2 + $0x150] sm:$0xff]
        %v410 = vld [vmem:[%s2 + $0x158] sm:$0xff]
        %v411 = vld [vmem:[%s2 + $0x160] sm:$0xff]
        %v412 = vld [vmem:[%s2 + $0x168] sm:$0xff]
        %v413 = vld [vmem:[%s2 + $0x170] sm:$0xff]
        %v414 = vld [vmem:[%s2 + $0x178] sm:$0xff]
        %416 = vset.pattern.permute.xlu0 0
        %417 = vperm.xlu0 %416, %v367
        %v418 = vpop.permute.xlu0 %417
        %421 = vset.pattern.permute.xlu0 0
        %422 = vperm.xlu0 %421, %v368
        %v423 = vpop.permute.xlu0 %422
        %426 = vset.pattern.permute.xlu0 0
        %427 = vperm.xlu0 %426, %v369
        %v428 = vpop.permute.xlu0 %427
        %431 = vset.pattern.permute.xlu0 0
        %432 = vperm.xlu0 %431, %v370
        %v433 = vpop.permute.xlu0 %432
        %436 = vset.pattern.permute.xlu0 0
        %437 = vperm.xlu0 %436, %v371
        %v438 = vpop.permute.xlu0 %437
        %441 = vset.pattern.permute.xlu0 0
        %442 = vperm.xlu0 %441, %v372
        %v443 = vpop.permute.xlu0 %442
        %446 = vset.pattern.permute.xlu0 0
        %447 = vperm.xlu0 %446, %v373
        %v448 = vpop.permute.xlu0 %447
        %451 = vset.pattern.permute.xlu0 0
        %452 = vperm.xlu0 %451, %v374
        %v453 = vpop.permute.xlu0 %452
        %456 = vset.pattern.permute.xlu0 0
        %457 = vperm.xlu0 %456, %v375
        %v458 = vpop.permute.xlu0 %457
        %461 = vset.pattern.permute.xlu0 0
        %462 = vperm.xlu0 %461, %v376
        %v463 = vpop.permute.xlu0 %462
        %466 = vset.pattern.permute.xlu0 0
        %467 = vperm.xlu0 %466, %v377
        %v468 = vpop.permute.xlu0 %467
        %471 = vset.pattern.permute.xlu0 0
        %472 = vperm.xlu0 %471, %v378
        %v473 = vpop.permute.xlu0 %472
        %476 = vset.pattern.permute.xlu0 0
        %477 = vperm.xlu0 %476, %v379
        %v478 = vpop.permute.xlu0 %477
        %481 = vset.pattern.permute.xlu0 0
        %482 = vperm.xlu0 %481, %v380
        %v483 = vpop.permute.xlu0 %482
        %486 = vset.pattern.permute.xlu0 0
        %487 = vperm.xlu0 %486, %v381
        %v488 = vpop.permute.xlu0 %487
        %491 = vset.pattern.permute.xlu0 0
        %492 = vperm.xlu0 %491, %v382
        %v493 = vpop.permute.xlu0 %492
        %496 = vset.pattern.permute.xlu0 0
        %497 = vperm.xlu0 %496, %v383
        %v498 = vpop.permute.xlu0 %497
        %501 = vset.pattern.permute.xlu0 0
        %502 = vperm.xlu0 %501, %v384
        %v503 = vpop.permute.xlu0 %502
        %506 = vset.pattern.permute.xlu0 0
        %507 = vperm.xlu0 %506, %v385
        %v508 = vpop.permute.xlu0 %507
        %511 = vset.pattern.permute.xlu0 0
        %512 = vperm.xlu0 %511, %v386
        %v513 = vpop.permute.xlu0 %512
        %516 = vset.pattern.permute.xlu0 0
        %517 = vperm.xlu0 %516, %v387
        %v518 = vpop.permute.xlu0 %517
        %521 = vset.pattern.permute.xlu0 0
        %522 = vperm.xlu0 %521, %v388
        %v523 = vpop.permute.xlu0 %522
        %526 = vset.pattern.permute.xlu0 0
        %527 = vperm.xlu0 %526, %v389
        %v528 = vpop.permute.xlu0 %527
        %531 = vset.pattern.permute.xlu0 0
        %532 = vperm.xlu0 %531, %v390
        %v533 = vpop.permute.xlu0 %532
        %536 = vset.pattern.permute.xlu0 0
        %537 = vperm.xlu0 %536, %v391
        %v538 = vpop.permute.xlu0 %537
        %541 = vset.pattern.permute.xlu0 0
        %542 = vperm.xlu0 %541, %v392
        %v543 = vpop.permute.xlu0 %542
        %546 = vset.pattern.permute.xlu0 0
        %547 = vperm.xlu0 %546, %v393
        %v548 = vpop.permute.xlu0 %547
        %551 = vset.pattern.permute.xlu0 0
        %552 = vperm.xlu0 %551, %v394
        %v553 = vpop.permute.xlu0 %552
        %556 = vset.pattern.permute.xlu0 0
        %557 = vperm.xlu0 %556, %v395
        %v558 = vpop.permute.xlu0 %557
        %561 = vset.pattern.permute.xlu0 0
        %562 = vperm.xlu0 %561, %v396
        %v563 = vpop.permute.xlu0 %562
        %566 = vset.pattern.permute.xlu0 0
        %567 = vperm.xlu0 %566, %v397
        %v568 = vpop.permute.xlu0 %567
        %571 = vset.pattern.permute.xlu0 0
        %572 = vperm.xlu0 %571, %v398
        %v573 = vpop.permute.xlu0 %572
        %576 = vset.pattern.permute.xlu0 0
        %577 = vperm.xlu0 %576, %v399
        %v578 = vpop.permute.xlu0 %577
        %581 = vset.pattern.permute.xlu0 0
        %582 = vperm.xlu0 %581, %v400
        %v583 = vpop.permute.xlu0 %582
        %586 = vset.pattern.permute.xlu0 0
        %587 = vperm.xlu0 %586, %v401
        %v588 = vpop.permute.xlu0 %587
        %591 = vset.pattern.permute.xlu0 0
        %592 = vperm.xlu0 %591, %v402
        %v593 = vpop.permute.xlu0 %592
        %596 = vset.pattern.permute.xlu0 0
        %597 = vperm.xlu0 %596, %v403
        %v598 = vpop.permute.xlu0 %597
        %601 = vset.pattern.permute.xlu0 0
        %602 = vperm.xlu0 %601, %v404
        %v603 = vpop.permute.xlu0 %602
        %606 = vset.pattern.permute.xlu0 0
        %607 = vperm.xlu0 %606, %v405
        %v608 = vpop.permute.xlu0 %607
        %611 = vset.pattern.permute.xlu0 0
        %612 = vperm.xlu0 %611, %v406
        %v613 = vpop.permute.xlu0 %612
        %616 = vset.pattern.permute.xlu0 0
        %617 = vperm.xlu0 %616, %v407
        %v618 = vpop.permute.xlu0 %617
        %621 = vset.pattern.permute.xlu0 0
        %622 = vperm.xlu0 %621, %v408
        %v623 = vpop.permute.xlu0 %622
        %626 = vset.pattern.permute.xlu0 0
        %627 = vperm.xlu0 %626, %v409
        %v628 = vpop.permute.xlu0 %627
        %631 = vset.pattern.permute.xlu0 0
        %632 = vperm.xlu0 %631, %v410
        %v633 = vpop.permute.xlu0 %632
        %636 = vset.pattern.permute.xlu0 0
        %637 = vperm.xlu0 %636, %v411
        %v638 = vpop.permute.xlu0 %637
        %641 = vset.pattern.permute.xlu0 0
        %642 = vperm.xlu0 %641, %v412
        %v643 = vpop.permute.xlu0 %642
        %646 = vset.pattern.permute.xlu0 0
        %647 = vperm.xlu0 %646, %v413
        %v648 = vpop.permute.xlu0 %647
        %651 = vset.pattern.permute.xlu0 0
        %652 = vperm.xlu0 %651, %v414
        %v653 = vpop.permute.xlu0 %652
        %655 = vmatprep.subr.mxu0 %v318
        %656 = vmatpush1.msra.mxu0 %v317
        %657 = vmatprep.subr.mxu0 %v316
        %658 = vmatpush1.msra.mxu0 %v315
        %659 = vmatprep.subr.mxu0 %v314
        %660 = vmatpush1.msra.mxu0 %v313
        %661 = vmatprep.subr.mxu0 %v312
        %662 = vmatpush1.msra.mxu0 %v311
        %663 = vmatprep.subr.mxu0 %v310
        %664 = vmatpush1.msra.mxu0 %v309
        %665 = vmatprep.subr.mxu0 %v308
        %666 = vmatpush1.msra.mxu0 %v307
        %667 = vmatprep.subr.mxu0 %v306
        %668 = vmatpush1.msra.mxu0 %v305
        %669 = vmatprep.subr.mxu0 %v304
        %670 = vmatpush1.msra.mxu0 %v303
        %671 = vmatprep.subr.mxu0 %v302
        %672 = vmatpush1.msra.mxu0 %v301
        %673 = vmatprep.subr.mxu0 %v300
        %674 = vmatpush1.msra.mxu0 %v299
        %675 = vmatprep.subr.mxu0 %v298
        %676 = vmatpush1.msra.mxu0 %v297
        %677 = vmatprep.subr.mxu0 %v296
        %678 = vmatpush1.msra.mxu0 %v295
        %679 = vmatprep.subr.mxu0 %v294
        %680 = vmatpush1.msra.mxu0 %v293
        %681 = vmatprep.subr.mxu0 %v292
        %682 = vmatpush1.msra.mxu0 %v291
        %683 = vmatprep.subr.mxu0 %v290
        %684 = vmatpush1.msra.mxu0 %v289
        %685 = vmatprep.subr.mxu0 %v288
        %686 = vmatpush1.msra.mxu0 %v287
        %687 = vmatprep.subr.mxu0 0.0
        %688 = vmatpush2.msra.mxu0 0.0
        %689 = vmatprep.subr.mxu0 0.0
        %690 = vmatpush2.msra.mxu0 0.0
        %691 = vmatprep.subr.mxu0 0.0
        %692 = vmatpush2.msra.mxu0 0.0
        %693 = vmatprep.subr.mxu0 0.0
        %694 = vmatpush2.msra.mxu0 0.0
        %695 = vmatprep.subr.mxu0 0.0
        %696 = vmatpush2.msra.mxu0 0.0
        %697 = vmatprep.subr.mxu0 0.0
        %698 = vmatpush2.msra.mxu0 0.0
        %699 = vmatprep.subr.mxu0 0.0
        %700 = vmatpush2.msra.mxu0 0.0
        %701 = vmatprep.subr.mxu0 0.0
        %702 = vmatpush2.msra.mxu0 0.0
        %703 = vmatprep.subr.mxu0 0.0
        %704 = vmatpush2.msra.mxu0 0.0
        %705 = vmatprep.subr.mxu0 0.0
        %706 = vmatpush2.msra.mxu0 0.0
        %707 = vmatprep.subr.mxu0 0.0
        %708 = vmatpush2.msra.mxu0 0.0
        %709 = vmatprep.subr.mxu0 0.0
        %710 = vmatpush2.msra.mxu0 0.0
        %711 = vmatprep.subr.mxu0 0.0
        %712 = vmatpush2.msra.mxu0 0.0
        %713 = vmatprep.subr.mxu0 0.0
        %714 = vmatpush2.msra.mxu0 0.0
        %715 = vmatprep.subr.mxu0 0.0
        %716 = vmatpush2.msra.mxu0 0.0
        %717 = vmatprep.subr.mxu0 0.0
        %718 = vmatpush2.msra.mxu0 0.0
        %719 = vmatprep.mubr.f32.mxu0 0.0
        %720 = vmatmul.mubr.f32.gmra.mxu0 %v319
        %v721 = vpop.f32.mrf.mxu0
        %v722 = vadd.f32 %v418, %v721
        %v723 = vpop.f32.mrf.mxu0
        %v724 = vadd.f32 %v418, %v723
        %725 = vmatprep.mubr.f32.mxu0 0.0
        %726 = vmatmul.mubr.f32.gmra.mxu0 %v320
        %v727 = vpop.f32.mrf.mxu0
        %v728 = vadd.f32 %v423, %v727
        %v729 = vpop.f32.mrf.mxu0
        %v730 = vadd.f32 %v423, %v729
        %731 = vmatprep.mubr.f32.mxu0 0.0
        %732 = vmatmul.mubr.f32.gmra.mxu0 %v321
        %v733 = vpop.f32.mrf.mxu0
        %v734 = vadd.f32 %v428, %v733
        %v735 = vpop.f32.mrf.mxu0
        %v736 = vadd.f32 %v428, %v735
        %737 = vmatprep.mubr.f32.mxu0 0.0
        %738 = vmatmul.mubr.f32.gmra.mxu0 %v322
        %v739 = vpop.f32.mrf.mxu0
        %v740 = vadd.f32 %v433, %v739
        %v741 = vpop.f32.mrf.mxu0
        %v742 = vadd.f32 %v433, %v741
        %743 = vmatprep.mubr.f32.mxu0 0.0
        %744 = vmatmul.mubr.f32.gmra.mxu0 %v323
        %v745 = vpop.f32.mrf.mxu0
        %v746 = vadd.f32 %v438, %v745
        %v747 = vpop.f32.mrf.mxu0
        %v748 = vadd.f32 %v438, %v747
        %749 = vmatprep.mubr.f32.mxu0 0.0
        %750 = vmatmul.mubr.f32.gmra.mxu0 %v324
        %v751 = vpop.f32.mrf.mxu0
        %v752 = vadd.f32 %v443, %v751
        %v753 = vpop.f32.mrf.mxu0
        %v754 = vadd.f32 %v443, %v753
        %755 = vmatprep.mubr.f32.mxu0 0.0
        %756 = vmatmul.mubr.f32.gmra.mxu0 %v325
        %v757 = vpop.f32.mrf.mxu0
        %v758 = vadd.f32 %v448, %v757
        %v759 = vpop.f32.mrf.mxu0
        %v760 = vadd.f32 %v448, %v759
        %761 = vmatprep.mubr.f32.mxu0 0.0
        %762 = vmatmul.mubr.f32.gmra.mxu0 %v326
        %v763 = vpop.f32.mrf.mxu0
        %v764 = vadd.f32 %v453, %v763
        %v765 = vpop.f32.mrf.mxu0
        %v766 = vadd.f32 %v453, %v765
        %767 = vmatprep.mubr.f32.mxu0 0.0
        %768 = vmatmul.mubr.f32.gmra.mxu0 %v327
        %v769 = vpop.f32.mrf.mxu0
        %v770 = vadd.f32 %v458, %v769
        %v771 = vpop.f32.mrf.mxu0
        %v772 = vadd.f32 %v458, %v771
        %773 = vmatprep.mubr.f32.mxu0 0.0
        %774 = vmatmul.mubr.f32.gmra.mxu0 %v328
        %v775 = vpop.f32.mrf.mxu0
        %v776 = vadd.f32 %v463, %v775
        %v777 = vpop.f32.mrf.mxu0
        %v778 = vadd.f32 %v463, %v777
        %779 = vmatprep.mubr.f32.mxu0 0.0
        %780 = vmatmul.mubr.f32.gmra.mxu0 %v329
        %v781 = vpop.f32.mrf.mxu0
        %v782 = vadd.f32 %v468, %v781
        %v783 = vpop.f32.mrf.mxu0
        %v784 = vadd.f32 %v468, %v783
        %785 = vmatprep.mubr.f32.mxu0 0.0
        %786 = vmatmul.mubr.f32.gmra.mxu0 %v330
        %v787 = vpop.f32.mrf.mxu0
        %v788 = vadd.f32 %v473, %v787
        %v789 = vpop.f32.mrf.mxu0
        %v790 = vadd.f32 %v473, %v789
        %791 = vmatprep.mubr.f32.mxu0 0.0
        %792 = vmatmul.mubr.f32.gmra.mxu0 %v331
        %v793 = vpop.f32.mrf.mxu0
        %v794 = vadd.f32 %v478, %v793
        %v795 = vpop.f32.mrf.mxu0
        %v796 = vadd.f32 %v478, %v795
        %797 = vmatprep.mubr.f32.mxu0 0.0
        %798 = vmatmul.mubr.f32.gmra.mxu0 %v332
        %v799 = vpop.f32.mrf.mxu0
        %v800 = vadd.f32 %v483, %v799
        %v801 = vpop.f32.mrf.mxu0
        %v802 = vadd.f32 %v483, %v801
        %803 = vmatprep.mubr.f32.mxu0 0.0
        %804 = vmatmul.mubr.f32.gmra.mxu0 %v333
        %v805 = vpop.f32.mrf.mxu0
        %v806 = vadd.f32 %v488, %v805
        %v807 = vpop.f32.mrf.mxu0
        %v808 = vadd.f32 %v488, %v807
        %809 = vmatprep.mubr.f32.mxu0 0.0
        %810 = vmatmul.mubr.f32.gmra.mxu0 %v334
        %v811 = vpop.f32.mrf.mxu0
        %v812 = vadd.f32 %v493, %v811
        %v813 = vpop.f32.mrf.mxu0
        %v814 = vadd.f32 %v493, %v813
        %815 = vmatprep.mubr.f32.mxu0 0.0
        %816 = vmatmul.mubr.f32.gmra.mxu0 %v335
        %v817 = vpop.f32.mrf.mxu0
        %v818 = vadd.f32 %v498, %v817
        %v819 = vpop.f32.mrf.mxu0
        %v820 = vadd.f32 %v498, %v819
        %821 = vmatprep.mubr.f32.mxu0 0.0
        %822 = vmatmul.mubr.f32.gmra.mxu0 %v336
        %v823 = vpop.f32.mrf.mxu0
        %v824 = vadd.f32 %v503, %v823
        %v825 = vpop.f32.mrf.mxu0
        %v826 = vadd.f32 %v503, %v825
        %827 = vmatprep.mubr.f32.mxu0 0.0
        %828 = vmatmul.mubr.f32.gmra.mxu0 %v337
        %v829 = vpop.f32.mrf.mxu0
        %v830 = vadd.f32 %v508, %v829
        %v831 = vpop.f32.mrf.mxu0
        %v832 = vadd.f32 %v508, %v831
        %833 = vmatprep.mubr.f32.mxu0 0.0
        %834 = vmatmul.mubr.f32.gmra.mxu0 %v338
        %v835 = vpop.f32.mrf.mxu0
        %v836 = vadd.f32 %v513, %v835
        %v837 = vpop.f32.mrf.mxu0
        %v838 = vadd.f32 %v513, %v837
        %839 = vmatprep.mubr.f32.mxu0 0.0
        %840 = vmatmul.mubr.f32.gmra.mxu0 %v339
        %v841 = vpop.f32.mrf.mxu0
        %v842 = vadd.f32 %v518, %v841
        %v843 = vpop.f32.mrf.mxu0
        %v844 = vadd.f32 %v518, %v843
        %845 = vmatprep.mubr.f32.mxu0 0.0
        %846 = vmatmul.mubr.f32.gmra.mxu0 %v340
        %v847 = vpop.f32.mrf.mxu0
        %v848 = vadd.f32 %v523, %v847
        %v849 = vpop.f32.mrf.mxu0
        %v850 = vadd.f32 %v523, %v849
        %851 = vmatprep.mubr.f32.mxu0 0.0
        %852 = vmatmul.mubr.f32.gmra.mxu0 %v341
        %v853 = vpop.f32.mrf.mxu0
        %v854 = vadd.f32 %v528, %v853
        %v855 = vpop.f32.mrf.mxu0
        %v856 = vadd.f32 %v528, %v855
        %857 = vmatprep.mubr.f32.mxu0 0.0
        %858 = vmatmul.mubr.f32.gmra.mxu0 %v342
        %v859 = vpop.f32.mrf.mxu0
        %v860 = vadd.f32 %v533, %v859
        %v861 = vpop.f32.mrf.mxu0
        %v862 = vadd.f32 %v533, %v861
        %863 = vmatprep.mubr.f32.mxu0 0.0
        %864 = vmatmul.mubr.f32.gmra.mxu0 %v343
        %v865 = vpop.f32.mrf.mxu0
        %v866 = vadd.f32 %v538, %v865
        %v867 = vpop.f32.mrf.mxu0
        %v868 = vadd.f32 %v538, %v867
        %869 = vmatprep.mubr.f32.mxu0 0.0
        %870 = vmatmul.mubr.f32.gmra.mxu0 %v344
        %v871 = vpop.f32.mrf.mxu0
        %v872 = vadd.f32 %v543, %v871
        %v873 = vpop.f32.mrf.mxu0
        %v874 = vadd.f32 %v543, %v873
        %875 = vmatprep.mubr.f32.mxu0 0.0
        %876 = vmatmul.mubr.f32.gmra.mxu0 %v345
        %v877 = vpop.f32.mrf.mxu0
        %v878 = vadd.f32 %v548, %v877
        %v879 = vpop.f32.mrf.mxu0
        %v880 = vadd.f32 %v548, %v879
        %881 = vmatprep.mubr.f32.mxu0 0.0
        %882 = vmatmul.mubr.f32.gmra.mxu0 %v346
        %v883 = vpop.f32.mrf.mxu0
        %v884 = vadd.f32 %v553, %v883
        %v885 = vpop.f32.mrf.mxu0
        %v886 = vadd.f32 %v553, %v885
        %887 = vmatprep.mubr.f32.mxu0 0.0
        %888 = vmatmul.mubr.f32.gmra.mxu0 %v347
        %v889 = vpop.f32.mrf.mxu0
        %v890 = vadd.f32 %v558, %v889
        %v891 = vpop.f32.mrf.mxu0
        %v892 = vadd.f32 %v558, %v891
        %893 = vmatprep.mubr.f32.mxu0 0.0
        %894 = vmatmul.mubr.f32.gmra.mxu0 %v348
        %v895 = vpop.f32.mrf.mxu0
        %v896 = vadd.f32 %v563, %v895
        %v897 = vpop.f32.mrf.mxu0
        %v898 = vadd.f32 %v563, %v897
        %899 = vmatprep.mubr.f32.mxu0 0.0
        %900 = vmatmul.mubr.f32.gmra.mxu0 %v349
        %v901 = vpop.f32.mrf.mxu0
        %v902 = vadd.f32 %v568, %v901
        %v903 = vpop.f32.mrf.mxu0
        %v904 = vadd.f32 %v568, %v903
        %905 = vmatprep.mubr.f32.mxu0 0.0
        %906 = vmatmul.mubr.f32.gmra.mxu0 %v350
        %v907 = vpop.f32.mrf.mxu0
        %v908 = vadd.f32 %v573, %v907
        %v909 = vpop.f32.mrf.mxu0
        %v910 = vadd.f32 %v573, %v909
        %911 = vmatprep.mubr.f32.mxu0 0.0
        %912 = vmatmul.mubr.f32.gmra.mxu0 %v351
        %v913 = vpop.f32.mrf.mxu0
        %v914 = vadd.f32 %v578, %v913
        %v915 = vpop.f32.mrf.mxu0
        %v916 = vadd.f32 %v578, %v915
        %917 = vmatprep.mubr.f32.mxu0 0.0
        %918 = vmatmul.mubr.f32.gmra.mxu0 %v352
        %v919 = vpop.f32.mrf.mxu0
        %v920 = vadd.f32 %v583, %v919
        %v921 = vpop.f32.mrf.mxu0
        %v922 = vadd.f32 %v583, %v921
        %923 = vmatprep.mubr.f32.mxu0 0.0
        %924 = vmatmul.mubr.f32.gmra.mxu0 %v353
        %v925 = vpop.f32.mrf.mxu0
        %v926 = vadd.f32 %v588, %v925
        %v927 = vpop.f32.mrf.mxu0
        %v928 = vadd.f32 %v588, %v927
        %929 = vmatprep.mubr.f32.mxu0 0.0
        %930 = vmatmul.mubr.f32.gmra.mxu0 %v354
        %v931 = vpop.f32.mrf.mxu0
        %v932 = vadd.f32 %v593, %v931
        %v933 = vpop.f32.mrf.mxu0
        %v934 = vadd.f32 %v593, %v933
        %935 = vmatprep.mubr.f32.mxu0 0.0
        %936 = vmatmul.mubr.f32.gmra.mxu0 %v355
        %v937 = vpop.f32.mrf.mxu0
        %v938 = vadd.f32 %v598, %v937
        %v939 = vpop.f32.mrf.mxu0
        %v940 = vadd.f32 %v598, %v939
        %941 = vmatprep.mubr.f32.mxu0 0.0
        %942 = vmatmul.mubr.f32.gmra.mxu0 %v356
        %v943 = vpop.f32.mrf.mxu0
        %v944 = vadd.f32 %v603, %v943
        %v945 = vpop.f32.mrf.mxu0
        %v946 = vadd.f32 %v603, %v945
        %947 = vmatprep.mubr.f32.mxu0 0.0
        %948 = vmatmul.mubr.f32.gmra.mxu0 %v357
        %v949 = vpop.f32.mrf.mxu0
        %v950 = vadd.f32 %v608, %v949
        %v951 = vpop.f32.mrf.mxu0
        %v952 = vadd.f32 %v608, %v951
        %953 = vmatprep.mubr.f32.mxu0 0.0
        %954 = vmatmul.mubr.f32.gmra.mxu0 %v358
        %v955 = vpop.f32.mrf.mxu0
        %v956 = vadd.f32 %v613, %v955
        %v957 = vpop.f32.mrf.mxu0
        %v958 = vadd.f32 %v613, %v957
        %959 = vmatprep.mubr.f32.mxu0 0.0
        %960 = vmatmul.mubr.f32.gmra.mxu0 %v359
        %v961 = vpop.f32.mrf.mxu0
        %v962 = vadd.f32 %v618, %v961
        %v963 = vpop.f32.mrf.mxu0
        %v964 = vadd.f32 %v618, %v963
        %965 = vmatprep.mubr.f32.mxu0 0.0
        %966 = vmatmul.mubr.f32.gmra.mxu0 %v360
        %v967 = vpop.f32.mrf.mxu0
        %v968 = vadd.f32 %v623, %v967
        %v969 = vpop.f32.mrf.mxu0
        %v970 = vadd.f32 %v623, %v969
        %971 = vmatprep.mubr.f32.mxu0 0.0
        %972 = vmatmul.mubr.f32.gmra.mxu0 %v361
        %v973 = vpop.f32.mrf.mxu0
        %v974 = vadd.f32 %v628, %v973
        %v975 = vpop.f32.mrf.mxu0
        %v976 = vadd.f32 %v628, %v975
        %977 = vmatprep.mubr.f32.mxu0 0.0
        %978 = vmatmul.mubr.f32.gmra.mxu0 %v362
        %v979 = vpop.f32.mrf.mxu0
        %v980 = vadd.f32 %v633, %v979
        %v981 = vpop.f32.mrf.mxu0
        %v982 = vadd.f32 %v633, %v981
        %983 = vmatprep.mubr.f32.mxu0 0.0
        %984 = vmatmul.mubr.f32.gmra.mxu0 %v363
        %v985 = vpop.f32.mrf.mxu0
        %v986 = vadd.f32 %v638, %v985
        %v987 = vpop.f32.mrf.mxu0
        %v988 = vadd.f32 %v638, %v987
        %989 = vmatprep.mubr.f32.mxu0 0.0
        %990 = vmatmul.mubr.f32.gmra.mxu0 %v364
        %v991 = vpop.f32.mrf.mxu0
        %v992 = vadd.f32 %v643, %v991
        %v993 = vpop.f32.mrf.mxu0
        %v994 = vadd.f32 %v643, %v993
        %995 = vmatprep.mubr.f32.mxu0 0.0
        %996 = vmatmul.mubr.f32.gmra.mxu0 %v365
        %v997 = vpop.f32.mrf.mxu0
        %v998 = vadd.f32 %v648, %v997
        %v999 = vpop.f32.mrf.mxu0
        %v1000 = vadd.f32 %v648, %v999
        %1001 = vmatprep.mubr.f32.mxu0 0.0
        %1002 = vmatmul.mubr.f32.gmra.mxu0 %v366
        %v1003 = vpop.f32.mrf.mxu0
        %v1004 = vadd.f32 %v653, %v1003
        %v1005 = vpop.f32.mrf.mxu0
        %v1006 = vadd.f32 %v653, %v1005
        %1007 = vdwg.mxu0
        %1008 = vst [vmem:[%s268] sm:$0xff] %v722
        %1009 = vst [vmem:[%s268 + $0x8] sm:$0xff] %v724
        %1010 = vst [vmem:[%s268 + $0x10] sm:$0xff] %v728
        %1011 = vst [vmem:[%s268 + $0x18] sm:$0xff] %v730
        %1012 = vst [vmem:[%s268 + $0x20] sm:$0xff] %v734
        %1013 = vst [vmem:[%s268 + $0x28] sm:$0xff] %v736
        %1014 = vst [vmem:[%s268 + $0x30] sm:$0xff] %v740
        %1015 = vst [vmem:[%s268 + $0x38] sm:$0xff] %v742
        %1016 = vst [vmem:[%s268 + $0x40] sm:$0xff] %v746
        %1017 = vst [vmem:[%s268 + $0x48] sm:$0xff] %v748
        %1018 = vst [vmem:[%s268 + $0x50] sm:$0xff] %v752
        %1019 = vst [vmem:[%s268 + $0x58] sm:$0xff] %v754
        %1020 = vst [vmem:[%s268 + $0x60] sm:$0xff] %v758
        %1021 = vst [vmem:[%s268 + $0x68] sm:$0xff] %v760
        %1022 = vst [vmem:[%s268 + $0x70] sm:$0xff] %v764
        %1023 = vst [vmem:[%s268 + $0x78] sm:$0xff] %v766
        %1024 = vst [vmem:[%s268 + $0x80] sm:$0xff] %v770
        %1025 = vst [vmem:[%s268 + $0x88] sm:$0xff] %v772
        %1026 = vst [vmem:[%s268 + $0x90] sm:$0xff] %v776
        %1027 = vst [vmem:[%s268 + $0x98] sm:$0xff] %v778
        %1028 = vst [vmem:[%s268 + $0xa0] sm:$0xff] %v782
        %1029 = vst [vmem:[%s268 + $0xa8] sm:$0xff] %v784
        %1030 = vst [vmem:[%s268 + $0xb0] sm:$0xff] %v788
        %1031 = vst [vmem:[%s268 + $0xb8] sm:$0xff] %v790
        %1032 = vst [vmem:[%s268 + $0xc0] sm:$0xff] %v794
        %1033 = vst [vmem:[%s268 + $0xc8] sm:$0xff] %v796
        %1034 = vst [vmem:[%s268 + $0xd0] sm:$0xff] %v800
        %1035 = vst [vmem:[%s268 + $0xd8] sm:$0xff] %v802
        %1036 = vst [vmem:[%s268 + $0xe0] sm:$0xff] %v806
        %1037 = vst [vmem:[%s268 + $0xe8] sm:$0xff] %v808
        %1038 = vst [vmem:[%s268 + $0xf0] sm:$0xff] %v812
        %1039 = vst [vmem:[%s268 + $0xf8] sm:$0xff] %v814
        %1040 = vxpose.xlu0.b32.start [1/16] %v818, 128
        %1041 = vxpose.xlu0.b32.cont [2/16] %v824, 128
        %1042 = vxpose.xlu0.b32.cont [3/16] %v830, 128
        %1043 = vxpose.xlu0.b32.cont [4/16] %v836, 128
        %1044 = vxpose.xlu0.b32.cont [5/16] %v842, 128
        %1045 = vxpose.xlu0.b32.cont [6/16] %v848, 128
        %1046 = vxpose.xlu0.b32.cont [7/16] %v854, 128
        %1047 = vxpose.xlu0.b32.cont [8/16] %v860, 128
        %1048 = vxpose.xlu0.b32.cont [9/16] %v866, 128
        %1049 = vxpose.xlu0.b32.cont [10/16] %v872, 128
        %1050 = vxpose.xlu0.b32.cont [11/16] %v878, 128
        %1051 = vxpose.xlu0.b32.cont [12/16] %v884, 128
        %1052 = vxpose.xlu0.b32.cont [13/16] %v890, 128
        %1053 = vxpose.xlu0.b32.cont [14/16] %v896, 128
        %1054 = vxpose.xlu0.b32.cont [15/16] %v902, 128
        %1055 = vxpose.xlu0.b32.end [16/16] %v908, 128
        %v1056 = vpop.trf.xlu0
        %v1057 = vpop.trf.xlu0
        %v1058 = vpop.trf.xlu0
        %v1059 = vpop.trf.xlu0
        %v1060 = vpop.trf.xlu0
        %v1061 = vpop.trf.xlu0
        %v1062 = vpop.trf.xlu0
        %v1063 = vpop.trf.xlu0
        %v1064 = vpop.trf.xlu0
        %v1065 = vpop.trf.xlu0
        %v1066 = vpop.trf.xlu0
        %v1067 = vpop.trf.xlu0
        %v1068 = vpop.trf.xlu0
        %v1069 = vpop.trf.xlu0
        %v1070 = vpop.trf.xlu0
        %v1071 = vpop.trf.xlu0
        %1072 = vxpose.xlu0.b32.start [1/16] %v820, 128
        %1073 = vxpose.xlu0.b32.cont [2/16] %v826, 128
        %1074 = vxpose.xlu0.b32.cont [3/16] %v832, 128
        %1075 = vxpose.xlu0.b32.cont [4/16] %v838, 128
        %1076 = vxpose.xlu0.b32.cont [5/16] %v844, 128
        %1077 = vxpose.xlu0.b32.cont [6/16] %v850, 128
        %1078 = vxpose.xlu0.b32.cont [7/16] %v856, 128
        %1079 = vxpose.xlu0.b32.cont [8/16] %v862, 128
        %1080 = vxpose.xlu0.b32.cont [9/16] %v868, 128
        %1081 = vxpose.xlu0.b32.cont [10/16] %v874, 128
        %1082 = vxpose.xlu0.b32.cont [11/16] %v880, 128
        %1083 = vxpose.xlu0.b32.cont [12/16] %v886, 128
        %1084 = vxpose.xlu0.b32.cont [13/16] %v892, 128
        %1085 = vxpose.xlu0.b32.cont [14/16] %v898, 128
        %1086 = vxpose.xlu0.b32.cont [15/16] %v904, 128
        %1087 = vxpose.xlu0.b32.end [16/16] %v910, 128
        %v1088 = vpop.trf.xlu0
        %v1089 = vpop.trf.xlu0
        %v1090 = vpop.trf.xlu0
        %v1091 = vpop.trf.xlu0
        %v1092 = vpop.trf.xlu0
        %v1093 = vpop.trf.xlu0
        %v1094 = vpop.trf.xlu0
        %v1095 = vpop.trf.xlu0
        %v1096 = vpop.trf.xlu0
        %v1097 = vpop.trf.xlu0
        %v1098 = vpop.trf.xlu0
        %v1099 = vpop.trf.xlu0
        %v1100 = vpop.trf.xlu0
        %v1101 = vpop.trf.xlu0
        %v1102 = vpop.trf.xlu0
        %v1103 = vpop.trf.xlu0
        %1104 = vst [vmem:[%s275] sm:$0xff] %v1056
        %1105 = vst [vmem:[%s275 + $0x8] sm:$0xff] %v1057
        %1106 = vst [vmem:[%s275 + $0x10] sm:$0xff] %v1058
        %1107 = vst [vmem:[%s275 + $0x18] sm:$0xff] %v1059
        %1108 = vst [vmem:[%s275 + $0x20] sm:$0xff] %v1060
        %1109 = vst [vmem:[%s275 + $0x28] sm:$0xff] %v1061
        %1110 = vst [vmem:[%s275 + $0x30] sm:$0xff] %v1062
        %1111 = vst [vmem:[%s275 + $0x38] sm:$0xff] %v1063
        %1112 = vst [vmem:[%s275 + $0x40] sm:$0xff] %v1064
        %1113 = vst [vmem:[%s275 + $0x48] sm:$0xff] %v1065
        %1114 = vst [vmem:[%s275 + $0x50] sm:$0xff] %v1066
        %1115 = vst [vmem:[%s275 + $0x58] sm:$0xff] %v1067
        %1116 = vst [vmem:[%s275 + $0x60] sm:$0xff] %v1068
        %1117 = vst [vmem:[%s275 + $0x68] sm:$0xff] %v1069
        %1118 = vst [vmem:[%s275 + $0x70] sm:$0xff] %v1070
        %1119 = vst [vmem:[%s275 + $0x78] sm:$0xff] %v1071
        %1120 = vst [vmem:[%s275 + $0x80] sm:$0xff] %v1088
        %1121 = vst [vmem:[%s275 + $0x88] sm:$0xff] %v1089
        %1122 = vst [vmem:[%s275 + $0x90] sm:$0xff] %v1090
        %1123 = vst [vmem:[%s275 + $0x98] sm:$0xff] %v1091
        %1124 = vst [vmem:[%s275 + $0xa0] sm:$0xff] %v1092
        %1125 = vst [vmem:[%s275 + $0xa8] sm:$0xff] %v1093
        %1126 = vst [vmem:[%s275 + $0xb0] sm:$0xff] %v1094
        %1127 = vst [vmem:[%s275 + $0xb8] sm:$0xff] %v1095
        %1128 = vst [vmem:[%s275 + $0xc0] sm:$0xff] %v1096
        %1129 = vst [vmem:[%s275 + $0xc8] sm:$0xff] %v1097
        %1130 = vst [vmem:[%s275 + $0xd0] sm:$0xff] %v1098
        %1131 = vst [vmem:[%s275 + $0xd8] sm:$0xff] %v1099
        %1132 = vst [vmem:[%s275 + $0xe0] sm:$0xff] %v1100
        %1133 = vst [vmem:[%s275 + $0xe8] sm:$0xff] %v1101
        %1134 = vst [vmem:[%s275 + $0xf0] sm:$0xff] %v1102
        %1135 = vst [vmem:[%s275 + $0xf8] sm:$0xff] %v1103
        %1136 = vst [vmem:[%s282] sm:$0xff] %v914
        %1137 = vst [vmem:[%s282 + $0x8] sm:$0xff] %v916
        %1138 = vst [vmem:[%s282 + $0x10] sm:$0xff] %v920
        %1139 = vst [vmem:[%s282 + $0x18] sm:$0xff] %v922
        %1140 = vst [vmem:[%s282 + $0x20] sm:$0xff] %v926
        %1141 = vst [vmem:[%s282 + $0x28] sm:$0xff] %v928
        %1142 = vst [vmem:[%s282 + $0x30] sm:$0xff] %v932
        %1143 = vst [vmem:[%s282 + $0x38] sm:$0xff] %v934
        %1144 = vst [vmem:[%s282 + $0x40] sm:$0xff] %v938
        %1145 = vst [vmem:[%s282 + $0x48] sm:$0xff] %v940
        %1146 = vst [vmem:[%s282 + $0x50] sm:$0xff] %v944
        %1147 = vst [vmem:[%s282 + $0x58] sm:$0xff] %v946
        %1148 = vst [vmem:[%s282 + $0x60] sm:$0xff] %v950
        %1149 = vst [vmem:[%s282 + $0x68] sm:$0xff] %v952
        %1150 = vst [vmem:[%s282 + $0x70] sm:$0xff] %v956
        %1151 = vst [vmem:[%s282 + $0x78] sm:$0xff] %v958
        %1152 = vst [vmem:[%s282 + $0x80] sm:$0xff] %v962
        %1153 = vst [vmem:[%s282 + $0x88] sm:$0xff] %v964
        %1154 = vst [vmem:[%s282 + $0x90] sm:$0xff] %v968
        %1155 = vst [vmem:[%s282 + $0x98] sm:$0xff] %v970
        %1156 = vst [vmem:[%s282 + $0xa0] sm:$0xff] %v974
        %1157 = vst [vmem:[%s282 + $0xa8] sm:$0xff] %v976
        %1158 = vst [vmem:[%s282 + $0xb0] sm:$0xff] %v980
        %1159 = vst [vmem:[%s282 + $0xb8] sm:$0xff] %v982
        %1160 = vst [vmem:[%s282 + $0xc0] sm:$0xff] %v986
        %1161 = vst [vmem:[%s282 + $0xc8] sm:$0xff] %v988
        %1162 = vst [vmem:[%s282 + $0xd0] sm:$0xff] %v992
        %1163 = vst [vmem:[%s282 + $0xd8] sm:$0xff] %v994
        %1164 = vst [vmem:[%s282 + $0xe0] sm:$0xff] %v998
        %1165 = vst [vmem:[%s282 + $0xe8] sm:$0xff] %v1000
        %1166 = vst [vmem:[%s282 + $0xf0] sm:$0xff] %v1004
        %1167 = vst [vmem:[%s282 + $0xf8] sm:$0xff] %v1006
        %s1168 = sand.u32 %s118, 1
        %s1169 = scalar_lea.sflag [#allocation4], %s1168
        %s1170 = sand.u32 %s118, 1
        %s1171 = smul.addr %s1170, 256
        %s1172 = scalar_lea.vmem [#allocation5], %s1171
        %s1173 = sand.u32 %s26, 1
        %s1174 = scalar_lea.sflag [#allocation7], %s1173
        %s1175 = sand.u32 %s146, 1
        %s1176 = smul.addr %s1175, 256
        %s1177 = scalar_lea.vmem [#allocation6], %s1176
        %s1178 = sand.u32 %s26, 1
        %s1179 = scalar_lea.sflag [#allocation7], %s1178
        %s1180 = sand.u32 %s174, 1
        %s1181 = smul.addr %s1180, 256
        %s1182 = scalar_lea.vmem [#allocation8], %s1181
        // Predicated region
        $region37: #{tpu_custom_call.1} parent=31 // pred_check
          %p1183 = pneg %p128
        $region38: #{tpu_custom_call.1} parent=31 // pred_check_branch
          %1185 = sbr.rel (%p1183) target = $region40
        $region39: #{tpu_custom_call.1} parent=31 // pred_region
          %s1186 = smul.u32 2, %s31
          %s1188 = ssub.s32 4096, 4096
          %1189 = vsyncadd %s1169, %s1188
          %s1190 = smul.addr %s30, 32
          %s1191 = sadd.s32 %s1186, %s1190
          %s1192 = smul.addr %s1191, 128
          %s1193 = scalar_lea.hbm %s3, %s1192
          %s1194 = sshll.u32 %s1172, 4
          %s1195 = int_to_ptr.vmem [resolvable:$true] %s1194
          %1200 = dma.vmem_to_hbm [thread:$0]  %s1195, 4096, %s1193, %s1169, 256, 256, 16
        $region40: #{tpu_custom_call.1} parent=31 // pred_fallthru
          _
        // Predicated region
        $region41: #{tpu_custom_call.1} parent=31 // pred_check
          %p1201 = pneg %p156
        $region42: #{tpu_custom_call.1} parent=31 // pred_check_branch
          %1203 = sbr.rel (%p1201) target = $region44
        $region43: #{tpu_custom_call.1} parent=31 // pred_region
          %s1204 = smul.u32 32, %s31
          %s1206 = ssub.s32 4096, 4096
          %1207 = vsyncadd %s1174, %s1206
          %s1208 = smul.addr %s30, 32
          %s1209 = sadd.s32 %s1204, %s1208
          %s1210 = smul.addr %s1209, 128
          %s1211 = scalar_lea.hbm %s4, %s1210
          %s1212 = sshll.u32 %s1177, 4
          %s1213 = int_to_ptr.vmem [resolvable:$true] %s1212
          %1218 = dma.vmem_to_hbm [thread:$0]  %s1213, 4096, %s1211, %s1174, 128, 128, 8
        $region44: #{tpu_custom_call.1} parent=31 // pred_fallthru
          _
        // Predicated region
        $region45: #{tpu_custom_call.1} parent=31 // pred_check
          %p1219 = pneg %p184
        $region46: #{tpu_custom_call.1} parent=31 // pred_check_branch
          %1221 = sbr.rel (%p1219) target = $region48
        $region47: #{tpu_custom_call.1} parent=31 // pred_region
          %s1222 = smul.u32 2, %s31
          %s1224 = ssub.s32 4096, 4096
          %1225 = vsyncadd %s1179, %s1224
          %s1226 = smul.addr %s30, 32
          %s1227 = sadd.s32 %s1222, %s1226
          %s1228 = smul.addr %s1227, 128
          %s1229 = scalar_lea.hbm %s5, %s1228
          %s1230 = sshll.u32 %s1182, 4
          %s1231 = int_to_ptr.vmem [resolvable:$true] %s1230
          %1236 = dma.vmem_to_hbm [thread:$0]  %s1231, 4096, %s1229, %s1179, 256, 256, 16
        $region48: #{tpu_custom_call.1} parent=31 // pred_fallthru
          _
      $region32: #{tpu_custom_call.1} parent=5 // pred_fallthru
        _
      %p1237 = scmp.le.s32.totalorder 2, %s21
      // Predicated region
      $region49: #{tpu_custom_call.1} parent=5 // pred_check
        %p1238 = pneg %p1237
      $region50: #{tpu_custom_call.1} parent=5 // pred_check_branch
        %1240 = sbr.rel (%p1238) target = $region52
      $region51: #{tpu_custom_call.1} parent=5 // pred_region
        %s1241 = ssub.s32 %s21, 2
        // Predicated region
        $region53: #{tpu_custom_call.1} parent=51 // pred_check
          %p1242 = pneg %p134
        $region54: #{tpu_custom_call.1} parent=51 // pred_check_branch
          %1244 = sbr.rel (%p1242) target = $region56
        $region55: #{tpu_custom_call.1} parent=51 // pred_region
          %s1245 = sand.u32 %s119, 1
          %s1246 = scalar_lea.sflag [#allocation4], %s1245
          %s1247 = sand.u32 %s119, 1
          %s1248 = smul.addr %s1247, 256
          %s1249 = scalar_lea.vmem [#allocation5], %s1248
          %1250 = dma.done %s1246, 4096
        $region56: #{tpu_custom_call.1} parent=51 // pred_fallthru
          _
        // Predicated region
        $region57: #{tpu_custom_call.1} parent=51 // pred_check
          %p1251 = pneg %p162
        $region58: #{tpu_custom_call.1} parent=51 // pred_check_branch
          %1253 = sbr.rel (%p1251) target = $region60
        $region59: #{tpu_custom_call.1} parent=51 // pred_region
          %s1254 = sand.u32 %s27, 1
          %s1255 = scalar_lea.sflag [#allocation7], %s1254
          %s1256 = sand.u32 %s147, 1
          %s1257 = smul.addr %s1256, 256
          %s1258 = scalar_lea.vmem [#allocation6], %s1257
          %1259 = dma.done %s1255, 4096
        $region60: #{tpu_custom_call.1} parent=51 // pred_fallthru
          _
        // Predicated region
        $region61: #{tpu_custom_call.1} parent=51 // pred_check
          %p1260 = pneg %p190
        $region62: #{tpu_custom_call.1} parent=51 // pred_check_branch
          %1262 = sbr.rel (%p1260) target = $region64
        $region63: #{tpu_custom_call.1} parent=51 // pred_region
          %s1263 = sand.u32 %s27, 1
          %s1264 = scalar_lea.sflag [#allocation7], %s1263
          %s1265 = sand.u32 %s175, 1
          %s1266 = smul.addr %s1265, 256
          %s1267 = scalar_lea.vmem [#allocation8], %s1266
          %1268 = dma.done %s1264, 4096
        $region64: #{tpu_custom_call.1} parent=51 // pred_fallthru
          _
      $region52: #{tpu_custom_call.1} parent=5 // pred_fallthru
        _
    $region6: #{tpu_custom_call.1} parent=1 // loop_footer
      %s25 = sadd.s32 1, %s21
    $region7: #{tpu_custom_call.1} parent=1 // loop_footer_branch
      %20 = sbr.rel target = $region3
    $region8: #{tpu_custom_call.1} parent=1 // loop_exit
      _
    %1269 = vsyncpa [#allocation3], 1
    %s1270 = scalar_lea.sflag [#allocation3], 1
    %1271 = vsyncpa %s1270, 1
    %1272 = vsyncpa [#allocation4], 1
    %s1273 = scalar_lea.sflag [#allocation4], 1
    %1274 = vsyncpa %s1273, 1
    %1275 = vsyncpa [#allocation7], 1
    %s1276 = scalar_lea.sflag [#allocation7], 1
    %1277 = vsyncpa %s1276, 1

</llo_original>
